<compile_context>
chip_gen: v7x
topology: tpu7x:2x2x1
jax: 0.10.0
libtpu: 0.0.40
codegen_flags: <defaults>
</compile_context>

<pallas_src>
import jax
import jax.numpy as jnp
from jax import lax
from jax.experimental import pallas as pl
from jax.experimental.pallas import tpu as pltpu

INPUT_DIM = 51
HIDDEN = 100
PAD_IN = 128    # 51 zero-padded to one full lane tile
PAD_HID = 128   # 100 zero-padded to one full lane tile


def _round_up(n, m):
    return ((n + m - 1) // m) * m


def mlp_kernel(x_ref, w1_ref, b1_ref, w2_ref, b2_ref, w3_ref, b3_ref, out_ref):
    x = x_ref[...]                                            # (TB, 128) bf16
    # fc1 + ReLU: bf16 MXU operands, f32 accumulate; bias/ReLU in f32 (VPU).
    h1 = jnp.dot(x, w1_ref[...], preferred_element_type=jnp.float32)
    h1 = jnp.maximum(h1 + b1_ref[...], 0.0)
    # dropout1: identity (eval mode)
    # fc2 + ReLU
    h2 = jnp.dot(h1.astype(jnp.bfloat16), w2_ref[...],
                 preferred_element_type=jnp.float32)
    h2 = jnp.maximum(h2 + b2_ref[...], 0.0)                   # (TB, 128) f32
    # dropout2: identity (eval mode)
    # fc3 (128 -> 1): computed as w3_row @ h2^T so the result lands lane-dense
    # along the batch axis, shape (1, TB), avoiding 1-wide masked stores.
    y = lax.dot_general(w3_ref[...], h2,
                        dimension_numbers=(((1,), (1,)), ((), ())),
                        preferred_element_type=jnp.float32)   # (1, TB)
    out_ref[...] = (y + b3_ref[...]).astype(out_ref.dtype)


def simple_nn_forward(x, kp, tile_b=1024):
    """x: (batch, INPUT_DIM) f32.  kp: padded kernel params from pack_params()."""
    batch = x.shape[0]
    tb = min(tile_b, _round_up(batch, 128))
    tb = _round_up(tb, 128)
    padded = _round_up(batch, tb)
    num_tiles = padded // tb

    # One-time pad (batch -> multiple of tb, features -> 128) + bf16 cast of x.
    x_p = jnp.pad(x, ((0, padded - batch), (0, PAD_IN - INPUT_DIM)))
    x_p = x_p.astype(jnp.bfloat16)

    out = pl.pallas_call(
        mlp_kernel,
        out_shape=jax.ShapeDtypeStruct((1, padded), jnp.float32),
        grid=(num_tiles,),
        in_specs=[
            pl.BlockSpec((tb, PAD_IN), lambda i: (i, 0)),        # x tile (pipelined)
            pl.BlockSpec((PAD_IN, PAD_HID), lambda i: (0, 0)),   # w1 (VMEM-resident)
            pl.BlockSpec((1, PAD_HID), lambda i: (0, 0)),        # b1
            pl.BlockSpec((PAD_HID, PAD_HID), lambda i: (0, 0)),  # w2
            pl.BlockSpec((1, PAD_HID), lambda i: (0, 0)),        # b2
            pl.BlockSpec((1, PAD_HID), lambda i: (0, 0)),        # w3 row
            pl.BlockSpec((1, 1), lambda i: (0, 0)),              # b3
        ],
        out_specs=pl.BlockSpec((1, tb), lambda i: (0, i)),       # lane-dense slab
        compiler_params=pltpu.CompilerParams(
            dimension_semantics=("parallel",)),
    )(x_p, kp["w1"], kp["b1"], kp["w2"], kp["b2"], kp["w3"], kp["b3"])

    return out[0, :batch].reshape(batch, 1)


def init_params(key):
    """Logical (un-padded) f32 params matching nn.Linear, stored as (in, out)."""
    ks = jax.random.split(key, 6)

    def linear(kw, kb, fan_in, fan_out):
        bound = float(fan_in) ** -0.5
        w = jax.random.uniform(kw, (fan_in, fan_out), jnp.float32, -bound, bound)
        b = jax.random.uniform(kb, (1, fan_out), jnp.float32, -bound, bound)
        return w, b

    w1, b1 = linear(ks[0], ks[1], INPUT_DIM, HIDDEN)
    w2, b2 = linear(ks[2], ks[3], HIDDEN, HIDDEN)
    w3, b3 = linear(ks[4], ks[5], HIDDEN, 1)
    return {"w1": w1, "b1": b1, "w2": w2, "b2": b2, "w3": w3, "b3": b3}


def pack_params(p):
    """Zero-pad params to MXU-friendly (..., 128) shapes; bf16 for matmul weights."""
    def pad2(a, rows, cols):
        return jnp.pad(a, ((0, rows - a.shape[0]), (0, cols - a.shape[1])))

    return {
        "w1": pad2(p["w1"], PAD_IN, PAD_HID).astype(jnp.bfloat16),
        "b1": pad2(p["b1"], 1, PAD_HID),                  # f32
        "w2": pad2(p["w2"], PAD_HID, PAD_HID).astype(jnp.bfloat16),
        "b2": pad2(p["b2"], 1, PAD_HID),                  # f32
        "w3": pad2(p["w3"].T, 1, PAD_HID),                # (1, 128) f32 row
        "b3": p["b3"],                                    # (1, 1) f32
    }


def reference_forward(x, p):
    h1 = jnp.maximum(x @ p["w1"] + p["b1"], 0.0)
    h2 = jnp.maximum(h1 @ p["w2"] + p["b2"], 0.0)
    return h2 @ p["w3"] + p["b3"]


if __name__ == "__main__":
    key = jax.random.PRNGKey(0)
    k_params, k_x1, k_x2 = jax.random.split(key, 3)

    logical = init_params(k_params)
    kparams = pack_params(logical)

    # Small-shape check (single grid step).
    x_small = jax.random.normal(k_x1, (8, INPUT_DIM), jnp.float32)
    out_small = jax.block_until_ready(simple_nn_forward(x_small, kparams))
    ref_small = reference_forward(x_small, logical)
    assert out_small.shape == (8, 1)
    assert jnp.allclose(out_small, ref_small, atol=5e-2, rtol=5e-2)

    # Multi-tile check: exercises the batch grid, pipelining and batch padding.
    x_big = jax.random.normal(k_x2, (2085, INPUT_DIM), jnp.float32)
    out_big = jax.block_until_ready(simple_nn_forward(x_big, kparams))
    ref_big = reference_forward(x_big, logical)
    assert out_big.shape == (2085, 1)
    assert jnp.allclose(out_big, ref_big, atol=5e-2, rtol=5e-2)

    print("KERNEL_OK")
</pallas_src>

<mosaic_0001>
module attributes {stable_mosaic.version = 11 : i64} {
  func.func @mlp_kernel(%arg0: i32, %arg1: memref<128x128xbf16, #tpu.memory_space<vmem>>, %arg2: memref<128x128xbf16, #tpu.memory_space<vmem>>, %arg3: memref<1x128xf32, #tpu.memory_space<vmem>>, %arg4: memref<128x128xbf16, #tpu.memory_space<vmem>>, %arg5: memref<1x128xf32, #tpu.memory_space<vmem>>, %arg6: memref<1x128xf32, #tpu.memory_space<vmem>>, %arg7: memref<1x1xf32, #tpu.memory_space<vmem>>, %arg8: memref<1x128xf32, #tpu.memory_space<vmem>>) attributes {dimension_semantics = [#tpu.dimension_semantics<parallel>], iteration_bounds = array<i64: 1>, scalar_prefetch = 0 : i64, scratch_operands = 0 : i64, tpu.core_type = #tpu.core_type<tc>, window_params = [{transform_indices = @transform_0, window_bounds = array<i64: 128, 128>}, {pipeline_mode = #tpu.pipeline_mode<synchronous>, transform_indices = @transform_1, window_bounds = array<i64: 128, 128>}, {pipeline_mode = #tpu.pipeline_mode<synchronous>, transform_indices = @transform_2, window_bounds = array<i64: 1, 128>}, {pipeline_mode = #tpu.pipeline_mode<synchronous>, transform_indices = @transform_3, window_bounds = array<i64: 128, 128>}, {pipeline_mode = #tpu.pipeline_mode<synchronous>, transform_indices = @transform_4, window_bounds = array<i64: 1, 128>}, {pipeline_mode = #tpu.pipeline_mode<synchronous>, transform_indices = @transform_5, window_bounds = array<i64: 1, 128>}, {pipeline_mode = #tpu.pipeline_mode<synchronous>, transform_indices = @transform_6, window_bounds = array<i64: 1, 1>}, {transform_indices = @transform_7, window_bounds = array<i64: 1, 128>}]} {
    %c0 = arith.constant 0 : index
    %c0_0 = arith.constant 0 : index
    %0 = vector.load %arg1[%c0, %c0_0] : memref<128x128xbf16, #tpu.memory_space<vmem>>, vector<128x128xbf16>
    %c0_1 = arith.constant 0 : index
    %c0_2 = arith.constant 0 : index
    %1 = vector.load %arg2[%c0_1, %c0_2] : memref<128x128xbf16, #tpu.memory_space<vmem>>, vector<128x128xbf16>
    %cst = arith.constant dense<0.000000e+00> : vector<128x128xf32>
    %2 = tpu.matmul %0, %1, %cst {dimension_numbers = #tpu.dot_dimension_numbers<[1], [0], [0], [1], [0, 0, 1, 1], [], []>} : vector<128x128xbf16>, vector<128x128xbf16>, vector<128x128xf32> -> vector<128x128xf32>
    %c0_3 = arith.constant 0 : index
    %c0_4 = arith.constant 0 : index
    %3 = vector.load %arg3[%c0_3, %c0_4] : memref<1x128xf32, #tpu.memory_space<vmem>>, vector<1x128xf32>
    %4 = vector.broadcast %3 : vector<1x128xf32> to vector<128x128xf32>
    %5 = arith.addf %2, %4 : vector<128x128xf32>
    %cst_5 = arith.constant 0.000000e+00 : f32
    %6 = vector.broadcast %cst_5 : f32 to vector<128x128xf32>
    %7 = arith.maximumf %5, %6 : vector<128x128xf32>
    %8 = arith.truncf %7 : vector<128x128xf32> to vector<128x128xbf16>
    %c0_6 = arith.constant 0 : index
    %c0_7 = arith.constant 0 : index
    %9 = vector.load %arg4[%c0_6, %c0_7] : memref<128x128xbf16, #tpu.memory_space<vmem>>, vector<128x128xbf16>
    %cst_8 = arith.constant dense<0.000000e+00> : vector<128x128xf32>
    %10 = tpu.matmul %8, %9, %cst_8 {dimension_numbers = #tpu.dot_dimension_numbers<[1], [0], [0], [1], [0, 0, 1, 1], [], []>} : vector<128x128xbf16>, vector<128x128xbf16>, vector<128x128xf32> -> vector<128x128xf32>
    %c0_9 = arith.constant 0 : index
    %c0_10 = arith.constant 0 : index
    %11 = vector.load %arg5[%c0_9, %c0_10] : memref<1x128xf32, #tpu.memory_space<vmem>>, vector<1x128xf32>
    %12 = vector.broadcast %11 : vector<1x128xf32> to vector<128x128xf32>
    %13 = arith.addf %10, %12 : vector<128x128xf32>
    %cst_11 = arith.constant 0.000000e+00 : f32
    %14 = vector.broadcast %cst_11 : f32 to vector<128x128xf32>
    %15 = arith.maximumf %13, %14 : vector<128x128xf32>
    %c0_12 = arith.constant 0 : index
    %c0_13 = arith.constant 0 : index
    %16 = vector.load %arg6[%c0_12, %c0_13] : memref<1x128xf32, #tpu.memory_space<vmem>>, vector<1x128xf32>
    %cst_14 = arith.constant dense<0.000000e+00> : vector<1x128xf32>
    %17 = tpu.matmul %16, %15, %cst_14 {dimension_numbers = #tpu.dot_dimension_numbers<[1], [1], [0], [0], [0, 0, 1, 0], [], []>} : vector<1x128xf32>, vector<128x128xf32>, vector<1x128xf32> -> vector<1x128xf32>
    %c0_15 = arith.constant 0 : index
    %c0_16 = arith.constant 0 : index
    %18 = vector.load %arg7[%c0_15, %c0_16] : memref<1x1xf32, #tpu.memory_space<vmem>>, vector<1x1xf32>
    %19 = vector.broadcast %18 : vector<1x1xf32> to vector<1x128xf32>
    %20 = arith.addf %17, %19 : vector<1x128xf32>
    %c0_17 = arith.constant 0 : index
    %c0_18 = arith.constant 0 : index
    %21 = vector.load %arg8[%c0_17, %c0_18] : memref<1x128xf32, #tpu.memory_space<vmem>>, vector<1x128xf32>
    tpu.vector_store %arg8[%c0_17, %c0_18], %20 {strides = array<i32>} : memref<1x128xf32, #tpu.memory_space<vmem>>, vector<1x128xf32>,
    return
  }
  func.func @transform_0(%arg0: i32) -> (i32, i32) {
    %c0_i32 = arith.constant 0 : i32
    %c0_i32_0 = arith.constant 0 : i32
    return %arg0, %c0_i32 : i32, i32
  }
  func.func @transform_1(%arg0: i32) -> (i32, i32) {
    %c0_i32 = arith.constant 0 : i32
    %c0_i32_0 = arith.constant 0 : i32
    %c0_i32_1 = arith.constant 0 : i32
    return %c0_i32, %c0_i32_0 : i32, i32
  }
  func.func @transform_2(%arg0: i32) -> (i32, i32) {
    %c0_i32 = arith.constant 0 : i32
    %c0_i32_0 = arith.constant 0 : i32
    %c0_i32_1 = arith.constant 0 : i32
    return %c0_i32, %c0_i32_0 : i32, i32
  }
  func.func @transform_3(%arg0: i32) -> (i32, i32) {
    %c0_i32 = arith.constant 0 : i32
    %c0_i32_0 = arith.constant 0 : i32
    %c0_i32_1 = arith.constant 0 : i32
    return %c0_i32, %c0_i32_0 : i32, i32
  }
  func.func @transform_4(%arg0: i32) -> (i32, i32) {
    %c0_i32 = arith.constant 0 : i32
    %c0_i32_0 = arith.constant 0 : i32
    %c0_i32_1 = arith.constant 0 : i32
    return %c0_i32, %c0_i32_0 : i32, i32
  }
  func.func @transform_5(%arg0: i32) -> (i32, i32) {
    %c0_i32 = arith.constant 0 : i32
    %c0_i32_0 = arith.constant 0 : i32
    %c0_i32_1 = arith.constant 0 : i32
    return %c0_i32, %c0_i32_0 : i32, i32
  }
  func.func @transform_6(%arg0: i32) -> (i32, i32) {
    %c0_i32 = arith.constant 0 : i32
    %c0_i32_0 = arith.constant 0 : i32
    %c0_i32_1 = arith.constant 0 : i32
    return %c0_i32, %c0_i32_0 : i32, i32
  }
  func.func @transform_7(%arg0: i32) -> (i32, i32) {
    %c0_i32 = arith.constant 0 : i32
    %c0_i32_0 = arith.constant 0 : i32
    return %c0_i32, %arg0 : i32, i32
  }
}

</mosaic_0001>

<llo_original>
// kernel: tpu_custom_call.1
$region0: #{tpu_custom_call.1}
  #allocation0 [shape = 'u32[]', space=smem, size = 0x4, offset = 0x4, fixed_abs, tag = 'smem constant byte address 0x4 - core index']
  #allocation1 [shape = 'u32[144,128]{1,0:T(1,128)}', space=vmem, size = 0x12000, scoped, tag = 'internal scratch']
  #allocation2 [shape = 'f32[1,1]{1,0:T(1,128)S(1)}', space=vmem, size = 0x200, scoped, tag = 'scoped memory for tpu_custom_call.1']
  %s0 = inlined_call_operand.hbm [shape: bf16[128,128], index: 0, kind: input, shape index: {}]
  %s1 = inlined_call_operand.hbm [shape: bf16[128,128], index: 1, kind: input, shape index: {}]
  %s2 = inlined_call_operand.vmem [shape: f32[1,128], index: 2, kind: input, shape index: {}]
  %s3 = inlined_call_operand.hbm [shape: bf16[128,128], index: 3, kind: input, shape index: {}]
  %s4 = inlined_call_operand.vmem [shape: f32[1,128], index: 4, kind: input, shape index: {}]
  %s5 = inlined_call_operand.vmem [shape: f32[1,128], index: 5, kind: input, shape index: {}]
  %s6 = inlined_call_operand.<no memory space> [shape: f32[1,1], index: 6, kind: input, shape index: {}]
  %s7 = inlined_call_operand.hbm [shape: f32[1,128], index: 7, kind: output, shape index: {}]
  %s8 = sld [smem:[#allocation0]]
  $region50: #{tpu_custom_call.1} parent=0
    _
  %s10 = ssub.s32 1, %s8
  %s11 = scalar_select 0, %s10, %s8
  %v12 = vstv %s6
  %13 = vst [vmem:[#allocation2] sm:$0x1] %v12
  $region1: #{tpu_custom_call.1} parent=0
    #allocation3 [shape = 'u8[32768]{0}', space=vmem, size = 0x8000, scoped, tag = 'input window, operand 0, single buffered']
    #allocation4 [shape = 's32[1]{0}', space=sflag, size = 0x4, scoped, tag = 'scoped memory for tpu_custom_call.1']
    #allocation5 [shape = 's32[1]{0}', space=sflag, size = 0x4, scoped, tag = 'scoped memory for tpu_custom_call.1']
    #allocation6 [shape = 'u8[32768]{0}', space=vmem, size = 0x8000, scoped, tag = 'input window, operand 1, single buffered']
    #allocation7 [shape = 's32[1]{0}', space=sflag, size = 0x4, scoped, tag = 'scoped memory for tpu_custom_call.1']
    #allocation8 [shape = 'u8[32768]{0}', space=vmem, size = 0x8000, scoped, tag = 'input window, operand 3, single buffered']
    #allocation9 [shape = 'u8[512]{0}', space=vmem, size = 0x400, scoped, tag = 'output window, operand 0, single buffered']
    %14 = vsyncpa [#allocation4], 0
    %15 = vsyncpa [#allocation7], 0
    %16 = vsyncpa [#allocation5], 0
    // Predicated region
    $region2: #{tpu_custom_call.1} parent=1 // pred_check
      _
    $region3: #{tpu_custom_call.1} parent=1 // pred_check_branch
      %18 = sbr.rel (0) target = $region5
    $region4: #{tpu_custom_call.1} parent=1 // pred_region
      %s20 = ssub.s32 1024, 1024
      %21 = vsyncadd [#allocation4], %s20
      %s22 = sshll.u32 [#allocation3], 4
      %s23 = int_to_ptr.vmem [resolvable:$true] %s22
      %28 = dma.hbm_to_vmem [thread:$0]  %s0, 1024, %s23, [#allocation4], 64, 64, 4
    $region5: #{tpu_custom_call.1} parent=1 // pred_fallthru
      _
    // Predicated region
    $region6: #{tpu_custom_call.1} parent=1 // pred_check
      _
    $region7: #{tpu_custom_call.1} parent=1 // pred_check_branch
      %30 = sbr.rel (0) target = $region9
    $region8: #{tpu_custom_call.1} parent=1 // pred_region
      %s32 = ssub.s32 1024, 1024
      %33 = vsyncadd [#allocation7], %s32
      %s34 = sshll.u32 [#allocation6], 4
      %s35 = int_to_ptr.vmem [resolvable:$true] %s34
      %40 = dma.hbm_to_vmem [thread:$0]  %s1, 1024, %s35, [#allocation7], 64, 64, 4
    $region9: #{tpu_custom_call.1} parent=1 // pred_fallthru
      _
    // Predicated region
    $region10: #{tpu_custom_call.1} parent=1 // pred_check
      _
    $region11: #{tpu_custom_call.1} parent=1 // pred_check_branch
      %42 = sbr.rel (0) target = $region13
    $region12: #{tpu_custom_call.1} parent=1 // pred_region
      _
    $region13: #{tpu_custom_call.1} parent=1 // pred_fallthru
      _
    // Predicated region
    $region14: #{tpu_custom_call.1} parent=1 // pred_check
      _
    $region15: #{tpu_custom_call.1} parent=1 // pred_check_branch
      %44 = sbr.rel (0) target = $region17
    $region16: #{tpu_custom_call.1} parent=1 // pred_region
      %s46 = ssub.s32 1024, 1024
      %47 = vsyncadd [#allocation7], %s46
      %s48 = sshll.u32 [#allocation8], 4
      %s49 = int_to_ptr.vmem [resolvable:$true] %s48
      %54 = dma.hbm_to_vmem [thread:$0]  %s3, 1024, %s49, [#allocation7], 64, 64, 4
    $region17: #{tpu_custom_call.1} parent=1 // pred_fallthru
      _
    // Predicated region
    $region18: #{tpu_custom_call.1} parent=1 // pred_check
      _
    $region19: #{tpu_custom_call.1} parent=1 // pred_check_branch
      %56 = sbr.rel (0) target = $region21
    $region20: #{tpu_custom_call.1} parent=1 // pred_region
      _
    $region21: #{tpu_custom_call.1} parent=1 // pred_fallthru
      _
    // Predicated region
    $region22: #{tpu_custom_call.1} parent=1 // pred_check
      _
    $region23: #{tpu_custom_call.1} parent=1 // pred_check_branch
      %58 = sbr.rel (0) target = $region25
    $region24: #{tpu_custom_call.1} parent=1 // pred_region
      _
    $region25: #{tpu_custom_call.1} parent=1 // pred_fallthru
      _
    // Predicated region
    $region26: #{tpu_custom_call.1} parent=1 // pred_check
      _
    $region27: #{tpu_custom_call.1} parent=1 // pred_check_branch
      %60 = sbr.rel (0) target = $region29
    $region28: #{tpu_custom_call.1} parent=1 // pred_region
      _
    $region29: #{tpu_custom_call.1} parent=1 // pred_fallthru
      _
    // Predicated region
    $region30: #{tpu_custom_call.1} parent=1 // pred_check
      _
    $region31: #{tpu_custom_call.1} parent=1 // pred_check_branch
      %62 = sbr.rel (0) target = $region33
    $region32: #{tpu_custom_call.1} parent=1 // pred_region
      %63 = dma.done [#allocation4], 1024
    $region33: #{tpu_custom_call.1} parent=1 // pred_fallthru
      _
    // Predicated region
    $region34: #{tpu_custom_call.1} parent=1 // pred_check
      _
    $region35: #{tpu_custom_call.1} parent=1 // pred_check_branch
      %65 = sbr.rel (0) target = $region37
    $region36: #{tpu_custom_call.1} parent=1 // pred_region
      %66 = dma.done [#allocation7], 1024
    $region37: #{tpu_custom_call.1} parent=1 // pred_fallthru
      _
    // Predicated region
    $region38: #{tpu_custom_call.1} parent=1 // pred_check
      _
    $region39: #{tpu_custom_call.1} parent=1 // pred_check_branch
      %68 = sbr.rel (0) target = $region41
    $region40: #{tpu_custom_call.1} parent=1 // pred_region
      %69 = dma.done [#allocation7], 1024
    $region41: #{tpu_custom_call.1} parent=1 // pred_fallthru
      _
    %v71 = vld [vmem:[#allocation3] sm:$0xf]
    %v72 = vld [vmem:[#allocation3 + $0x4] sm:$0xf]
    %v73 = vld [vmem:[#allocation3 + $0x8] sm:$0xf]
    %v74 = vld [vmem:[#allocation3 + $0xc] sm:$0xf]
    %v75 = vld [vmem:[#allocation3 + $0x10] sm:$0xf]
    %v76 = vld [vmem:[#allocation3 + $0x14] sm:$0xf]
    %v77 = vld [vmem:[#allocation3 + $0x18] sm:$0xf]
    %v78 = vld [vmem:[#allocation3 + $0x1c] sm:$0xf]
    %v79 = vld [vmem:[#allocation3 + $0x20] sm:$0xf]
    %v80 = vld [vmem:[#allocation3 + $0x24] sm:$0xf]
    %v81 = vld [vmem:[#allocation3 + $0x28] sm:$0xf]
    %v82 = vld [vmem:[#allocation3 + $0x2c] sm:$0xf]
    %v83 = vld [vmem:[#allocation3 + $0x30] sm:$0xf]
    %v84 = vld [vmem:[#allocation3 + $0x34] sm:$0xf]
    %v85 = vld [vmem:[#allocation3 + $0x38] sm:$0xf]
    %v86 = vld [vmem:[#allocation3 + $0x3c] sm:$0xf]
    %v87 = vld [vmem:[#allocation6] sm:$0xf]
    %v88 = vld [vmem:[#allocation6 + $0x4] sm:$0xf]
    %v89 = vld [vmem:[#allocation6 + $0x8] sm:$0xf]
    %v90 = vld [vmem:[#allocation6 + $0xc] sm:$0xf]
    %v91 = vld [vmem:[#allocation6 + $0x10] sm:$0xf]
    %v92 = vld [vmem:[#allocation6 + $0x14] sm:$0xf]
    %v93 = vld [vmem:[#allocation6 + $0x18] sm:$0xf]
    %v94 = vld [vmem:[#allocation6 + $0x1c] sm:$0xf]
    %v95 = vld [vmem:[#allocation6 + $0x20] sm:$0xf]
    %v96 = vld [vmem:[#allocation6 + $0x24] sm:$0xf]
    %v97 = vld [vmem:[#allocation6 + $0x28] sm:$0xf]
    %v98 = vld [vmem:[#allocation6 + $0x2c] sm:$0xf]
    %v99 = vld [vmem:[#allocation6 + $0x30] sm:$0xf]
    %v100 = vld [vmem:[#allocation6 + $0x34] sm:$0xf]
    %v101 = vld [vmem:[#allocation6 + $0x38] sm:$0xf]
    %v102 = vld [vmem:[#allocation6 + $0x3c] sm:$0xf]
    %v103 = vld [vmem:[%s2] sm:$0x1]
    %v105 = vlaneseq
    %v106 = vshrl.u32 %v105, 7
    %v107 = vsub.s32 0, %v106
    %v108 = vrot.slane %v103, %v107
    %v126 = vunpack.c.l.b16 %v71
    %v127 = vunpack.c.l.b16 %v72
    %v128 = vunpack.c.l.b16 %v73
    %v129 = vunpack.c.l.b16 %v74
    %v130 = vunpack.c.l.b16 %v75
    %v131 = vunpack.c.l.b16 %v76
    %v132 = vunpack.c.l.b16 %v77
    %v133 = vunpack.c.l.b16 %v78
    %v134 = vunpack.c.l.b16 %v79
    %v135 = vunpack.c.l.b16 %v80
    %v136 = vunpack.c.l.b16 %v81
    %v137 = vunpack.c.l.b16 %v82
    %v138 = vunpack.c.l.b16 %v83
    %v139 = vunpack.c.l.b16 %v84
    %v140 = vunpack.c.l.b16 %v85
    %v141 = vunpack.c.l.b16 %v86
    %v142 = vpack.c.b16 %v127, %v126
    %v143 = vpack.c.b16 %v129, %v128
    %v144 = vpack.c.b16 %v131, %v130
    %v145 = vpack.c.b16 %v133, %v132
    %v146 = vpack.c.b16 %v135, %v134
    %v147 = vpack.c.b16 %v137, %v136
    %v148 = vpack.c.b16 %v139, %v138
    %v149 = vpack.c.b16 %v141, %v140
    %v174 = vunpack.c.l.b16 %v87
    %v175 = vunpack.c.l.b16 %v88
    %v176 = vunpack.c.l.b16 %v89
    %v177 = vunpack.c.l.b16 %v90
    %v178 = vunpack.c.l.b16 %v91
    %v179 = vunpack.c.l.b16 %v92
    %v180 = vunpack.c.l.b16 %v93
    %v181 = vunpack.c.l.b16 %v94
    %v182 = vunpack.c.l.b16 %v95
    %v183 = vunpack.c.l.b16 %v96
    %v184 = vunpack.c.l.b16 %v97
    %v185 = vunpack.c.l.b16 %v98
    %v186 = vunpack.c.l.b16 %v99
    %v187 = vunpack.c.l.b16 %v100
    %v188 = vunpack.c.l.b16 %v101
    %v189 = vunpack.c.l.b16 %v102
    %v190 = vpack.c.b16 %v175, %v174
    %v191 = vpack.c.b16 %v177, %v176
    %v192 = vpack.c.b16 %v179, %v178
    %v193 = vpack.c.b16 %v181, %v180
    %v194 = vpack.c.b16 %v183, %v182
    %v195 = vpack.c.b16 %v185, %v184
    %v196 = vpack.c.b16 %v187, %v186
    %v197 = vpack.c.b16 %v189, %v188
    %206 = vmatprep.subr.bf16.mxu0 0
    %207 = vmatpush1.bf16.msra.mxu0 %v190
    %208 = vmatprep.subr.bf16.mxu0 0
    %209 = vmatpush1.bf16.msra.mxu0 %v191
    %210 = vmatprep.subr.bf16.mxu0 0
    %211 = vmatpush1.bf16.msra.mxu0 %v192
    %212 = vmatprep.subr.bf16.mxu0 0
    %213 = vmatpush1.bf16.msra.mxu0 %v193
    %214 = vmatprep.subr.bf16.mxu0 0
    %215 = vmatpush1.bf16.msra.mxu0 %v194
    %216 = vmatprep.subr.bf16.mxu0 0
    %217 = vmatpush1.bf16.msra.mxu0 %v195
    %218 = vmatprep.subr.bf16.mxu0 0
    %219 = vmatpush1.bf16.msra.mxu0 %v196
    %220 = vmatprep.subr.bf16.mxu0 0
    %221 = vmatpush1.bf16.msra.mxu0 %v197
    %222 = vmatprep.subr.bf16.mxu0 0
    %223 = vmatpush1.bf16.msra.mxu0 0
    %224 = vmatprep.subr.bf16.mxu0 0
    %225 = vmatpush1.bf16.msra.mxu0 0
    %226 = vmatprep.subr.bf16.mxu0 0
    %227 = vmatpush1.bf16.msra.mxu0 0
    %228 = vmatprep.subr.bf16.mxu0 0
    %229 = vmatpush1.bf16.msra.mxu0 0
    %230 = vmatprep.subr.bf16.mxu0 0
    %231 = vmatpush1.bf16.msra.mxu0 0
    %232 = vmatprep.subr.bf16.mxu0 0
    %233 = vmatpush1.bf16.msra.mxu0 0
    %234 = vmatprep.subr.bf16.mxu0 0
    %235 = vmatpush1.bf16.msra.mxu0 0
    %236 = vmatprep.subr.bf16.mxu0 0
    %237 = vmatpush1.bf16.msra.mxu0 0
    %238 = vmatprep.mubr.bf16.mxu0 0
    %239 = vmatmul.mubr.bf16.gmra.mrb[0].mxu0 %v142
    %v240 = vpop.f32.mrb[0].mxu0
    %v241 = vadd.f32 %v108, %v240
    %v242 = vpop.f32.mrb[0].mxu0
    %v243 = vpop.f32.mrb[0].mxu0
    %v244 = vadd.f32 %v108, %v243
    %v245 = vpop.f32.mrb[0].mxu0
    %246 = vmatprep.mubr.bf16.mxu0 0
    %247 = vmatmul.mubr.bf16.gmra.mrb[0].mxu0 %v143
    %v248 = vpop.f32.mrb[0].mxu0
    %v249 = vadd.f32 %v108, %v248
    %v250 = vpop.f32.mrb[0].mxu0
    %v251 = vpop.f32.mrb[0].mxu0
    %v252 = vadd.f32 %v108, %v251
    %v253 = vpop.f32.mrb[0].mxu0
    %254 = vmatprep.mubr.bf16.mxu0 0
    %255 = vmatmul.mubr.bf16.gmra.mrb[0].mxu0 %v144
    %v256 = vpop.f32.mrb[0].mxu0
    %v257 = vadd.f32 %v108, %v256
    %v258 = vpop.f32.mrb[0].mxu0
    %v259 = vpop.f32.mrb[0].mxu0
    %v260 = vadd.f32 %v108, %v259
    %v261 = vpop.f32.mrb[0].mxu0
    %262 = vmatprep.mubr.bf16.mxu0 0
    %263 = vmatmul.mubr.bf16.gmra.mrb[0].mxu0 %v145
    %v264 = vpop.f32.mrb[0].mxu0
    %v265 = vadd.f32 %v108, %v264
    %v266 = vpop.f32.mrb[0].mxu0
    %v267 = vpop.f32.mrb[0].mxu0
    %v268 = vadd.f32 %v108, %v267
    %v269 = vpop.f32.mrb[0].mxu0
    %270 = vmatprep.mubr.bf16.mxu0 0
    %271 = vmatmul.mubr.bf16.gmra.mrb[0].mxu0 %v146
    %v272 = vpop.f32.mrb[0].mxu0
    %v273 = vadd.f32 %v108, %v272
    %v274 = vpop.f32.mrb[0].mxu0
    %v275 = vpop.f32.mrb[0].mxu0
    %v276 = vadd.f32 %v108, %v275
    %v277 = vpop.f32.mrb[0].mxu0
    %278 = vmatprep.mubr.bf16.mxu0 0
    %279 = vmatmul.mubr.bf16.gmra.mrb[0].mxu0 %v147
    %v280 = vpop.f32.mrb[0].mxu0
    %v281 = vadd.f32 %v108, %v280
    %v282 = vpop.f32.mrb[0].mxu0
    %v283 = vpop.f32.mrb[0].mxu0
    %v284 = vadd.f32 %v108, %v283
    %v285 = vpop.f32.mrb[0].mxu0
    %286 = vmatprep.mubr.bf16.mxu0 0
    %287 = vmatmul.mubr.bf16.gmra.mrb[0].mxu0 %v148
    %v288 = vpop.f32.mrb[0].mxu0
    %v289 = vadd.f32 %v108, %v288
    %v290 = vpop.f32.mrb[0].mxu0
    %v291 = vpop.f32.mrb[0].mxu0
    %v292 = vadd.f32 %v108, %v291
    %v293 = vpop.f32.mrb[0].mxu0
    %294 = vmatprep.mubr.bf16.mxu0 0
    %295 = vmatmul.mubr.bf16.gmra.mrb[0].mxu0 %v149
    %v296 = vpop.f32.mrb[0].mxu0
    %v297 = vadd.f32 %v108, %v296
    %v298 = vpop.f32.mrb[0].mxu0
    %v299 = vpop.f32.mrb[0].mxu0
    %v300 = vadd.f32 %v108, %v299
    %v301 = vpop.f32.mrb[0].mxu0
    %302 = vdwg.mxu0
    %v303 = vmax.f32 %v241, 0.0
    %v304 = vmax.f32 %v244, 0.0
    %v305 = vmax.f32 %v249, 0.0
    %v306 = vmax.f32 %v252, 0.0
    %v307 = vmax.f32 %v257, 0.0
    %v308 = vmax.f32 %v260, 0.0
    %v309 = vmax.f32 %v265, 0.0
    %v310 = vmax.f32 %v268, 0.0
    %v311 = vmax.f32 %v273, 0.0
    %v312 = vmax.f32 %v276, 0.0
    %v313 = vmax.f32 %v281, 0.0
    %v314 = vmax.f32 %v284, 0.0
    %v315 = vmax.f32 %v289, 0.0
    %v316 = vmax.f32 %v292, 0.0
    %v317 = vmax.f32 %v297, 0.0
    %v318 = vmax.f32 %v300, 0.0
    %v319 = vpack.c.bf16 %v304, %v303
    %v320 = vpack.c.bf16 %v306, %v305
    %v321 = vpack.c.bf16 %v308, %v307
    %v322 = vpack.c.bf16 %v310, %v309
    %v323 = vpack.c.bf16 %v312, %v311
    %v324 = vpack.c.bf16 %v314, %v313
    %v325 = vpack.c.bf16 %v316, %v315
    %v326 = vpack.c.bf16 %v318, %v317
    %v327 = vld [vmem:[#allocation8] sm:$0xf]
    %v328 = vld [vmem:[#allocation8 + $0x4] sm:$0xf]
    %v329 = vld [vmem:[#allocation8 + $0x8] sm:$0xf]
    %v330 = vld [vmem:[#allocation8 + $0xc] sm:$0xf]
    %v331 = vld [vmem:[#allocation8 + $0x10] sm:$0xf]
    %v332 = vld [vmem:[#allocation8 + $0x14] sm:$0xf]
    %v333 = vld [vmem:[#allocation8 + $0x18] sm:$0xf]
    %v334 = vld [vmem:[#allocation8 + $0x1c] sm:$0xf]
    %v335 = vld [vmem:[#allocation8 + $0x20] sm:$0xf]
    %v336 = vld [vmem:[#allocation8 + $0x24] sm:$0xf]
    %v337 = vld [vmem:[#allocation8 + $0x28] sm:$0xf]
    %v338 = vld [vmem:[#allocation8 + $0x2c] sm:$0xf]
    %v339 = vld [vmem:[#allocation8 + $0x30] sm:$0xf]
    %v340 = vld [vmem:[#allocation8 + $0x34] sm:$0xf]
    %v341 = vld [vmem:[#allocation8 + $0x38] sm:$0xf]
    %v342 = vld [vmem:[#allocation8 + $0x3c] sm:$0xf]
    %v343 = vld [vmem:[%s4] sm:$0x1]
    %v345 = vlaneseq
    %v346 = vshrl.u32 %v345, 7
    %v347 = vsub.s32 0, %v346
    %v348 = vrot.slane %v343, %v347
    %v366 = vunpack.c.l.b16 %v327
    %v367 = vunpack.c.l.b16 %v328
    %v368 = vunpack.c.l.b16 %v329
    %v369 = vunpack.c.l.b16 %v330
    %v370 = vunpack.c.l.b16 %v331
    %v371 = vunpack.c.l.b16 %v332
    %v372 = vunpack.c.l.b16 %v333
    %v373 = vunpack.c.l.b16 %v334
    %v374 = vunpack.c.l.b16 %v335
    %v375 = vunpack.c.l.b16 %v336
    %v376 = vunpack.c.l.b16 %v337
    %v377 = vunpack.c.l.b16 %v338
    %v378 = vunpack.c.l.b16 %v339
    %v379 = vunpack.c.l.b16 %v340
    %v380 = vunpack.c.l.b16 %v341
    %v381 = vunpack.c.l.b16 %v342
    %v382 = vpack.c.b16 %v367, %v366
    %v383 = vpack.c.b16 %v369, %v368
    %v384 = vpack.c.b16 %v371, %v370
    %v385 = vpack.c.b16 %v373, %v372
    %v386 = vpack.c.b16 %v375, %v374
    %v387 = vpack.c.b16 %v377, %v376
    %v388 = vpack.c.b16 %v379, %v378
    %v389 = vpack.c.b16 %v381, %v380
    %398 = vmatprep.subr.bf16.mxu0 0
    %399 = vmatpush1.bf16.msra.mxu0 %v382
    %400 = vmatprep.subr.bf16.mxu0 0
    %401 = vmatpush1.bf16.msra.mxu0 %v383
    %402 = vmatprep.subr.bf16.mxu0 0
    %403 = vmatpush1.bf16.msra.mxu0 %v384
    %404 = vmatprep.subr.bf16.mxu0 0
    %405 = vmatpush1.bf16.msra.mxu0 %v385
    %406 = vmatprep.subr.bf16.mxu0 0
    %407 = vmatpush1.bf16.msra.mxu0 %v386
    %408 = vmatprep.subr.bf16.mxu0 0
    %409 = vmatpush1.bf16.msra.mxu0 %v387
    %410 = vmatprep.subr.bf16.mxu0 0
    %411 = vmatpush1.bf16.msra.mxu0 %v388
    %412 = vmatprep.subr.bf16.mxu0 0
    %413 = vmatpush1.bf16.msra.mxu0 %v389
    %414 = vmatprep.subr.bf16.mxu0 0
    %415 = vmatpush1.bf16.msra.mxu0 0
    %416 = vmatprep.subr.bf16.mxu0 0
    %417 = vmatpush1.bf16.msra.mxu0 0
    %418 = vmatprep.subr.bf16.mxu0 0
    %419 = vmatpush1.bf16.msra.mxu0 0
    %420 = vmatprep.subr.bf16.mxu0 0
    %421 = vmatpush1.bf16.msra.mxu0 0
    %422 = vmatprep.subr.bf16.mxu0 0
    %423 = vmatpush1.bf16.msra.mxu0 0
    %424 = vmatprep.subr.bf16.mxu0 0
    %425 = vmatpush1.bf16.msra.mxu0 0
    %426 = vmatprep.subr.bf16.mxu0 0
    %427 = vmatpush1.bf16.msra.mxu0 0
    %428 = vmatprep.subr.bf16.mxu0 0
    %429 = vmatpush1.bf16.msra.mxu0 0
    %430 = vmatprep.mubr.bf16.mxu0 0
    %431 = vmatmul.mubr.bf16.gmra.mrb[0].mxu0 %v319
    %v432 = vpop.f32.mrb[0].mxu0
    %v433 = vadd.f32 %v348, %v432
    %v434 = vpop.f32.mrb[0].mxu0
    %v435 = vpop.f32.mrb[0].mxu0
    %v436 = vadd.f32 %v348, %v435
    %v437 = vpop.f32.mrb[0].mxu0
    %438 = vmatprep.mubr.bf16.mxu0 0
    %439 = vmatmul.mubr.bf16.gmra.mrb[0].mxu0 %v320
    %v440 = vpop.f32.mrb[0].mxu0
    %v441 = vadd.f32 %v348, %v440
    %v442 = vpop.f32.mrb[0].mxu0
    %v443 = vpop.f32.mrb[0].mxu0
    %v444 = vadd.f32 %v348, %v443
    %v445 = vpop.f32.mrb[0].mxu0
    %446 = vmatprep.mubr.bf16.mxu0 0
    %447 = vmatmul.mubr.bf16.gmra.mrb[0].mxu0 %v321
    %v448 = vpop.f32.mrb[0].mxu0
    %v449 = vadd.f32 %v348, %v448
    %v450 = vpop.f32.mrb[0].mxu0
    %v451 = vpop.f32.mrb[0].mxu0
    %v452 = vadd.f32 %v348, %v451
    %v453 = vpop.f32.mrb[0].mxu0
    %454 = vmatprep.mubr.bf16.mxu0 0
    %455 = vmatmul.mubr.bf16.gmra.mrb[0].mxu0 %v322
    %v456 = vpop.f32.mrb[0].mxu0
    %v457 = vadd.f32 %v348, %v456
    %v458 = vpop.f32.mrb[0].mxu0
    %v459 = vpop.f32.mrb[0].mxu0
    %v460 = vadd.f32 %v348, %v459
    %v461 = vpop.f32.mrb[0].mxu0
    %462 = vmatprep.mubr.bf16.mxu0 0
    %463 = vmatmul.mubr.bf16.gmra.mrb[0].mxu0 %v323
    %v464 = vpop.f32.mrb[0].mxu0
    %v465 = vadd.f32 %v348, %v464
    %v466 = vpop.f32.mrb[0].mxu0
    %v467 = vpop.f32.mrb[0].mxu0
    %v468 = vadd.f32 %v348, %v467
    %v469 = vpop.f32.mrb[0].mxu0
    %470 = vmatprep.mubr.bf16.mxu0 0
    %471 = vmatmul.mubr.bf16.gmra.mrb[0].mxu0 %v324
    %v472 = vpop.f32.mrb[0].mxu0
    %v473 = vadd.f32 %v348, %v472
    %v474 = vpop.f32.mrb[0].mxu0
    %v475 = vpop.f32.mrb[0].mxu0
    %v476 = vadd.f32 %v348, %v475
    %v477 = vpop.f32.mrb[0].mxu0
    %478 = vmatprep.mubr.bf16.mxu0 0
    %479 = vmatmul.mubr.bf16.gmra.mrb[0].mxu0 %v325
    %v480 = vpop.f32.mrb[0].mxu0
    %v481 = vadd.f32 %v348, %v480
    %v482 = vpop.f32.mrb[0].mxu0
    %v483 = vpop.f32.mrb[0].mxu0
    %v484 = vadd.f32 %v348, %v483
    %v485 = vpop.f32.mrb[0].mxu0
    %486 = vmatprep.mubr.bf16.mxu0 0
    %487 = vmatmul.mubr.bf16.gmra.mrb[0].mxu0 %v326
    %v488 = vpop.f32.mrb[0].mxu0
    %v489 = vadd.f32 %v348, %v488
    %v490 = vpop.f32.mrb[0].mxu0
    %v491 = vpop.f32.mrb[0].mxu0
    %v492 = vadd.f32 %v348, %v491
    %v493 = vpop.f32.mrb[0].mxu0
    %494 = vdwg.mxu0
    %v495 = vmax.f32 %v433, 0.0
    %v496 = vmax.f32 %v436, 0.0
    %v497 = vmax.f32 %v441, 0.0
    %v498 = vmax.f32 %v444, 0.0
    %v499 = vmax.f32 %v449, 0.0
    %v500 = vmax.f32 %v452, 0.0
    %v501 = vmax.f32 %v457, 0.0
    %v502 = vmax.f32 %v460, 0.0
    %v503 = vmax.f32 %v465, 0.0
    %v504 = vmax.f32 %v468, 0.0
    %v505 = vmax.f32 %v473, 0.0
    %v506 = vmax.f32 %v476, 0.0
    %v507 = vmax.f32 %v481, 0.0
    %v508 = vmax.f32 %v484, 0.0
    %v509 = vmax.f32 %v489, 0.0
    %v510 = vmax.f32 %v492, 0.0
    %v511 = vld [vmem:[%s5] sm:$0x1]
    %v512 = vld [vmem:[#allocation2] sm:$0x1]
    %514 = vset.pattern.permute.xlu0 0
    %515 = vperm.xlu0 %514, %v512
    %v516 = vpop.permute.xlu0 %515
    %v518 = vlaneseq
    %v519 = vshrl.u32 %v518, 7
    %v520 = vsub.s32 0, %v519
    %v521 = vrot.slane %v516, %v520
    %522 = vmatprep.subr.mxu0 0.0
    %523 = vmatpush1.xpose.msra.mxu0 %v495
    %524 = vmatprep.subr.mxu0 0.0
    %525 = vmatpush1.xpose.msra.mxu0 %v496
    %526 = vmatprep.subr.mxu0 0.0
    %527 = vmatpush1.xpose.msra.mxu0 %v497
    %528 = vmatprep.subr.mxu0 0.0
    %529 = vmatpush1.xpose.msra.mxu0 %v498
    %530 = vmatprep.subr.mxu0 0.0
    %531 = vmatpush1.xpose.msra.mxu0 %v499
    %532 = vmatprep.subr.mxu0 0.0
    %533 = vmatpush1.xpose.msra.mxu0 %v500
    %534 = vmatprep.subr.mxu0 0.0
    %535 = vmatpush1.xpose.msra.mxu0 %v501
    %536 = vmatprep.subr.mxu0 0.0
    %537 = vmatpush1.xpose.msra.mxu0 %v502
    %538 = vmatprep.subr.mxu0 0.0
    %539 = vmatpush1.xpose.msra.mxu0 %v503
    %540 = vmatprep.subr.mxu0 0.0
    %541 = vmatpush1.xpose.msra.mxu0 %v504
    %542 = vmatprep.subr.mxu0 0.0
    %543 = vmatpush1.xpose.msra.mxu0 %v505
    %544 = vmatprep.subr.mxu0 0.0
    %545 = vmatpush1.xpose.msra.mxu0 %v506
    %546 = vmatprep.subr.mxu0 0.0
    %547 = vmatpush1.xpose.msra.mxu0 %v507
    %548 = vmatprep.subr.mxu0 0.0
    %549 = vmatpush1.xpose.msra.mxu0 %v508
    %550 = vmatprep.subr.mxu0 0.0
    %551 = vmatpush1.xpose.msra.mxu0 %v509
    %552 = vmatprep.subr.mxu0 0.0
    %553 = vmatpush1.xpose.msra.mxu0 %v510
    %554 = vmatprep.subr.mxu0 0.0
    %555 = vmatpush1.xpose.msra.mxu0 0.0
    %556 = vmatprep.subr.mxu0 0.0
    %557 = vmatpush1.xpose.msra.mxu0 0.0
    %558 = vmatprep.subr.mxu0 0.0
    %559 = vmatpush1.xpose.msra.mxu0 0.0
    %560 = vmatprep.subr.mxu0 0.0
    %561 = vmatpush1.xpose.msra.mxu0 0.0
    %562 = vmatprep.subr.mxu0 0.0
    %563 = vmatpush1.xpose.msra.mxu0 0.0
    %564 = vmatprep.subr.mxu0 0.0
    %565 = vmatpush1.xpose.msra.mxu0 0.0
    %566 = vmatprep.subr.mxu0 0.0
    %567 = vmatpush1.xpose.msra.mxu0 0.0
    %568 = vmatprep.subr.mxu0 0.0
    %569 = vmatpush1.xpose.msra.mxu0 0.0
    %570 = vmatprep.subr.mxu0 0.0
    %571 = vmatpush1.xpose.msra.mxu0 0.0
    %572 = vmatprep.subr.mxu0 0.0
    %573 = vmatpush1.xpose.msra.mxu0 0.0
    %574 = vmatprep.subr.mxu0 0.0
    %575 = vmatpush1.xpose.msra.mxu0 0.0
    %576 = vmatprep.subr.mxu0 0.0
    %577 = vmatpush1.xpose.msra.mxu0 0.0
    %578 = vmatprep.subr.mxu0 0.0
    %579 = vmatpush1.xpose.msra.mxu0 0.0
    %580 = vmatprep.subr.mxu0 0.0
    %581 = vmatpush1.xpose.msra.mxu0 0.0
    %582 = vmatprep.subr.mxu0 0.0
    %583 = vmatpush1.xpose.msra.mxu0 0.0
    %584 = vmatprep.subr.mxu0 0.0
    %585 = vmatpush1.xpose.msra.mxu0 0.0
    %586 = vmatprep.mubr.f32.mxu0 0.0
    %587 = vmatmul.mubr.f32.gmra.mrb[0].mxu0 %v511
    %v588 = vpop.f32.mrb[0].mxu0
    %v589 = vadd.f32 %v521, %v588
    %v590 = vpop.f32.mrb[0].mxu0
    %591 = vdwg.mxu0
    %592 = vst [vmem:[#allocation9] sm:$0x1] %v589
    // Predicated region
    $region42: #{tpu_custom_call.1} parent=1 // pred_check
      _
    $region43: #{tpu_custom_call.1} parent=1 // pred_check_branch
      %594 = sbr.rel (0) target = $region45
    $region44: #{tpu_custom_call.1} parent=1 // pred_region
      %s596 = ssub.s32 16, 16
      %597 = vsyncadd [#allocation5], %s596
      %s599 = sshll.u32 [#allocation9], 4
      %s600 = int_to_ptr.vmem [resolvable:$true] %s599
      %602 = dma.vmem_to_hbm [thread:$0]  %s600, 16, %s7, [#allocation5]
    $region45: #{tpu_custom_call.1} parent=1 // pred_fallthru
      _
    // Predicated region
    $region46: #{tpu_custom_call.1} parent=1 // pred_check
      _
    $region47: #{tpu_custom_call.1} parent=1 // pred_check_branch
      %604 = sbr.rel (0) target = $region49
    $region48: #{tpu_custom_call.1} parent=1 // pred_region
      %605 = dma.done [#allocation5], 16
    $region49: #{tpu_custom_call.1} parent=1 // pred_fallthru
      _
    %606 = vsyncpa [#allocation4], 1
    %607 = vsyncpa [#allocation7], 1
    %608 = vsyncpa [#allocation5], 1

</llo_original>
